<compile_context>
chip_gen: v7x
topology: tpu7x:2x2x1
jax: 0.10.0
libtpu: 0.0.40
codegen_flags: <defaults>
</compile_context>

<pallas_src>
import jax
import jax.numpy as jnp
from jax.experimental import pallas as pl
from jax.experimental.pallas import tpu as pltpu


def _round_up(x, m):
    return ((x + m - 1) // m) * m


# --------------------------------------------------------------------------- #
# Kernel
# --------------------------------------------------------------------------- #
def agent_embedding_kernel(
    obs_ref,    # [TB, obs_dim]      matmul dtype
    act_ref,    # [TB, act_dim]      matmul dtype
    h_ref,      # [TB, E_pad]  f32   previous GRU hidden (padded lanes are 0)
    w1o_ref,    # [obs_dim, E_pad]   fc1 weight rows for obs   (transposed)
    w1a_ref,    # [act_dim, E_pad]   fc1 weight rows for last_a
    b1_ref,     # [1, E_pad]   f32
    wih_ref,    # [E_pad, 3*E_pad]   GRU weight_ih, gate blocks [r | z | n]
    bih_ref,    # [1, 3*E_pad] f32
    whh_ref,    # [E_pad, 3*E_pad]   GRU weight_hh, gate blocks [r | z | n]
    bhh_ref,    # [1, 3*E_pad] f32
    w2_ref,     # [E_pad, E_pad]     fc2 weight (transposed)
    b2_ref,     # [1, E_pad]   f32
    out_ref,    # [TB, E_pad]  f32   fc2 output
    hout_ref,   # [TB, E_pad]  f32   new GRU hidden (aliases h_ref's HBM buffer)
):
    mm_dtype = w1o_ref.dtype
    E = h_ref.shape[-1]                      # = E_pad (multiple of 128, static)

    h = h_ref[...]                           # f32

    # Biases read/broadcast once per tile (JAX does not CSE broadcast_in_dim).
    b1 = b1_ref[...]
    bih = bih_ref[...]
    bhh = bhh_ref[...]
    b2 = b2_ref[...]

    # fc1 + relu:  concat(obs, last_a) @ W1  ==  obs @ W1_obs + last_a @ W1_act
    f1 = (
        jnp.dot(obs_ref[...], w1o_ref[...], preferred_element_type=jnp.float32)
        + jnp.dot(act_ref[...], w1a_ref[...], preferred_element_type=jnp.float32)
        + b1
    )
    f1 = jnp.maximum(f1, 0.0)

    # GRUCell (PyTorch semantics), fused [r|z|n] matmuls, f32 accumulation.
    gi = jnp.dot(f1.astype(mm_dtype), wih_ref[...],
                 preferred_element_type=jnp.float32) + bih
    gh = jnp.dot(h.astype(mm_dtype), whh_ref[...],
                 preferred_element_type=jnp.float32) + bhh

    # E is a multiple of 128, so these column slices are lane-tile aligned.
    i_r, i_z, i_n = gi[:, 0:E], gi[:, E:2 * E], gi[:, 2 * E:3 * E]
    h_r, h_z, h_n = gh[:, 0:E], gh[:, E:2 * E], gh[:, 2 * E:3 * E]

    r = jax.nn.sigmoid(i_r + h_r)
    z = jax.nn.sigmoid(i_z + h_z)
    n = jnp.tanh(i_n + r * h_n)
    h_new = (1.0 - z) * n + z * h            # all element-wise math stays f32

    hout_ref[...] = h_new.astype(hout_ref.dtype)

    # fc2
    out = jnp.dot(h_new.astype(mm_dtype), w2_ref[...],
                  preferred_element_type=jnp.float32) + b2
    out_ref[...] = out.astype(out_ref.dtype)


# --------------------------------------------------------------------------- #
# Wrapper
# --------------------------------------------------------------------------- #
def agent_embedding_forward(obs, last_a, h_padded, pp, *, tile_b=512,
                            vmem_limit_bytes=None):
    """One Agent_Embedding step.

    obs      : [B, obs_dim] f32
    last_a   : [B, act_dim] f32
    h_padded : [B, E_pad] f32 previous hidden in padded layout (or None ->
               zeros); padded lanes must be exactly zero.
    pp       : padded params from pad_params().

    Returns (fc2_out [B, E], new_hidden_padded [B, E_pad]).
    """
    B = obs.shape[0]
    obs_dim = pp["w1_obs"].shape[0]
    act_dim = pp["w1_act"].shape[0]
    E, E_pad = pp["E"], pp["E_pad"]
    mm_dtype = pp["w1_obs"].dtype

    if h_padded is None:
        h_padded = jnp.zeros((B, E_pad), jnp.float32)

    # Batch tiling: one grid step per tile_b rows; zero-pad B up if necessary.
    tb = min(tile_b, B)
    n_blocks = pl.cdiv(B, tb)
    B_pad = n_blocks * tb
    if B_pad != B:
        row_pad = ((0, B_pad - B), (0, 0))
        obs = jnp.pad(obs, row_pad)
        last_a = jnp.pad(last_a, row_pad)
        h_padded = jnp.pad(h_padded, row_pad)

    obs = obs.astype(mm_dtype)
    last_a = last_a.astype(mm_dtype)

    def rows(feat):          # batch-streamed blocks (pipelined over the grid)
        return pl.BlockSpec((tb, feat), lambda i: (i, 0))

    def resident(shape):     # weights/biases: same block every step -> stay in VMEM
        return pl.BlockSpec(shape, lambda i: (0, 0))

    out, h_new = pl.pallas_call(
        agent_embedding_kernel,
        grid=(n_blocks,),
        in_specs=[
            rows(obs_dim),                       # obs
            rows(act_dim),                       # last_a
            rows(E_pad),                         # h
            resident((obs_dim, E_pad)),          # w1_obs
            resident((act_dim, E_pad)),          # w1_act
            resident((1, E_pad)),                # b1
            resident((E_pad, 3 * E_pad)),        # w_ih
            resident((1, 3 * E_pad)),            # b_ih
            resident((E_pad, 3 * E_pad)),        # w_hh
            resident((1, 3 * E_pad)),            # b_hh
            resident((E_pad, E_pad)),            # w2
            resident((1, E_pad)),                # b2
        ],
        out_specs=(rows(E_pad), rows(E_pad)),
        out_shape=(
            jax.ShapeDtypeStruct((B_pad, E_pad), jnp.float32),
            jax.ShapeDtypeStruct((B_pad, E_pad), jnp.float32),
        ),
        input_output_aliases={2: 1},             # new hidden reuses h's buffer
        compiler_params=pltpu.CompilerParams(
            dimension_semantics=("parallel",),   # megacore split on v7x
            vmem_limit_bytes=vmem_limit_bytes,   # set explicitly for large E on v7x
        ),
    )(
        obs, last_a, h_padded,
        pp["w1_obs"], pp["w1_act"], pp["b1"],
        pp["w_ih"], pp["b_ih"],
        pp["w_hh"], pp["b_hh"],
        pp["w2"], pp["b2"],
    )

    return out[:B, :E], h_new[:B]


# --------------------------------------------------------------------------- #
# Parameters
# --------------------------------------------------------------------------- #
def init_params(key, input_dim, emb_dim):
    """Deterministic uniform init, PyTorch shapes but transposed to (in, out)."""
    ks = jax.random.split(key, 10)
    u = lambda k, shape, bound: jax.random.uniform(
        k, shape, minval=-bound, maxval=bound, dtype=jnp.float32)
    b1_bound = 1.0 / float(input_dim) ** 0.5
    bE_bound = 1.0 / float(emb_dim) ** 0.5
    return {
        "w1":   u(ks[0], (input_dim, emb_dim), b1_bound),
        "b1":   u(ks[1], (1, emb_dim), b1_bound),
        "w_ih": u(ks[2], (emb_dim, 3 * emb_dim), bE_bound),
        "b_ih": u(ks[3], (1, 3 * emb_dim), bE_bound),
        "w_hh": u(ks[4], (emb_dim, 3 * emb_dim), bE_bound),
        "b_hh": u(ks[5], (1, 3 * emb_dim), bE_bound),
        "w2":   u(ks[6], (emb_dim, emb_dim), bE_bound),
        "b2":   u(ks[7], (1, emb_dim), bE_bound),
    }


def pad_params(p, obs_dim, act_dim, emb_dim, compute_dtype=jnp.float32):
    """Zero-pad E to a lane-dense multiple of 128, split fc1 per input, and
    re-block the GRU gate weights so each [r|z|n] block is E_pad wide.
    compute_dtype=jnp.bfloat16 enables bf16 MXU operands on v6e/v7x."""
    E = emb_dim
    E_pad = _round_up(E, 128)

    def pad_cols(w):
        return jnp.pad(w, ((0, 0), (0, E_pad - w.shape[1])))

    def pad_gates(w, rows_new):
        r, z, n = w[:, :E], w[:, E:2 * E], w[:, 2 * E:]
        blocks = [jnp.pad(b, ((0, rows_new - w.shape[0]), (0, E_pad - E)))
                  for b in (r, z, n)]
        return jnp.concatenate(blocks, axis=1)

    w1 = p["w1"]
    cast = lambda w: w.astype(compute_dtype)
    return {
        "w1_obs": cast(pad_cols(w1[:obs_dim])),
        "w1_act": cast(pad_cols(w1[obs_dim:])),
        "b1":     pad_cols(p["b1"]).astype(jnp.float32),
        "w_ih":   cast(pad_gates(p["w_ih"], E_pad)),
        "b_ih":   pad_gates(p["b_ih"], 1).astype(jnp.float32),
        "w_hh":   cast(pad_gates(p["w_hh"], E_pad)),
        "b_hh":   pad_gates(p["b_hh"], 1).astype(jnp.float32),
        "w2":     cast(jnp.pad(p["w2"], ((0, E_pad - E), (0, E_pad - E)))),
        "b2":     pad_cols(p["b2"]).astype(jnp.float32),
        "E": E, "E_pad": E_pad,
    }


# --------------------------------------------------------------------------- #
# Pure-JAX reference of the PyTorch forward
# --------------------------------------------------------------------------- #
def _reference(obs, last_a, h, p):
    x = jnp.concatenate([obs, last_a], axis=-1)
    f1 = jax.nn.relu(x @ p["w1"] + p["b1"])
    gi = f1 @ p["w_ih"] + p["b_ih"]
    gh = h @ p["w_hh"] + p["b_hh"]
    E = h.shape[-1]
    r = jax.nn.sigmoid(gi[:, :E] + gh[:, :E])
    z = jax.nn.sigmoid(gi[:, E:2 * E] + gh[:, E:2 * E])
    n = jnp.tanh(gi[:, 2 * E:] + r * gh[:, 2 * E:])
    h_new = (1.0 - z) * n + z * h
    return h_new @ p["w2"] + p["b2"], h_new


# --------------------------------------------------------------------------- #
# Demo / correctness check
# --------------------------------------------------------------------------- #
if __name__ == "__main__":
    # Small synthetic shapes: obs_dim=20, action_dim=12, emb_dim=32, batch=4.
    obs_dim, action_dim, emb_dim, batch = 20, 12, 32, 4
    input_dim = obs_dim + action_dim

    key = jax.random.PRNGKey(0)
    k_obs, k_act, k_par, k_obs2, k_act2 = jax.random.split(key, 5)

    obs1 = jax.random.normal(k_obs, (batch, obs_dim), dtype=jnp.float32)
    act1 = jax.random.normal(k_act, (batch, action_dim), dtype=jnp.float32)
    obs2 = jax.random.normal(k_obs2, (batch, obs_dim), dtype=jnp.float32)
    act2 = jax.random.normal(k_act2, (batch, action_dim), dtype=jnp.float32)

    params = init_params(k_par, input_dim, emb_dim)
    # Default f32 matmuls so the 1e-5 reference check holds.
    # TODO(synk): use compute_dtype=jnp.bfloat16 here for v6e/v7x production runs.
    pp = pad_params(params, obs_dim, action_dim, emb_dim,
                    compute_dtype=jnp.float32)

    # References (unpadded params), computed before the kernel calls because the
    # kernel aliases/donates the hidden-state buffer it is given.
    h0 = jnp.zeros((batch, emb_dim), jnp.float32)        # rnn_hidden=None -> zeros
    ref_out1, ref_h1 = _reference(obs1, act1, h0, params)
    ref_out2, ref_h2 = _reference(obs2, act2, ref_h1, params)

    # Step 1 (hidden = None).
    out1, h1_pad = agent_embedding_forward(obs1, act1, None, pp)
    out1 = jax.block_until_ready(out1)
    h1_pad = jax.block_until_ready(h1_pad)

    assert jnp.allclose(out1, ref_out1, atol=1e-5, rtol=1e-5)
    assert jnp.allclose(h1_pad[:, :emb_dim], ref_h1, atol=1e-5, rtol=1e-5)
    assert bool(jnp.all(h1_pad[:, emb_dim:] == 0.0))     # padded lanes stay zero

    # Step 2: chain the padded hidden produced by the kernel (buffer is reused).
    out2, h2_pad = agent_embedding_forward(obs2, act2, h1_pad, pp)
    out2 = jax.block_until_ready(out2)
    h2_pad = jax.block_until_ready(h2_pad)

    assert jnp.allclose(out2, ref_out2, atol=1e-5, rtol=1e-5)
    assert jnp.allclose(h2_pad[:, :emb_dim], ref_h2, atol=1e-5, rtol=1e-5)

    print("KERNEL_OK")
</pallas_src>

<mosaic_0001>
module attributes {stable_mosaic.version = 11 : i64} {
  func.func @agent_embedding_kernel(%arg0: i32, %arg1: memref<4x20xf32, #tpu.memory_space<vmem>>, %arg2: memref<4x12xf32, #tpu.memory_space<vmem>>, %arg3: memref<4x128xf32, #tpu.memory_space<vmem>>, %arg4: memref<20x128xf32, #tpu.memory_space<vmem>>, %arg5: memref<12x128xf32, #tpu.memory_space<vmem>>, %arg6: memref<1x128xf32, #tpu.memory_space<vmem>>, %arg7: memref<128x384xf32, #tpu.memory_space<vmem>>, %arg8: memref<1x384xf32, #tpu.memory_space<vmem>>, %arg9: memref<128x384xf32, #tpu.memory_space<vmem>>, %arg10: memref<1x384xf32, #tpu.memory_space<vmem>>, %arg11: memref<128x128xf32, #tpu.memory_space<vmem>>, %arg12: memref<1x128xf32, #tpu.memory_space<vmem>>, %arg13: memref<4x128xf32, #tpu.memory_space<vmem>>, %arg14: memref<4x128xf32, #tpu.memory_space<vmem>>) attributes {dimension_semantics = [#tpu.dimension_semantics<parallel>], iteration_bounds = array<i64: 1>, scalar_prefetch = 0 : i64, scratch_operands = 0 : i64, tpu.core_type = #tpu.core_type<tc>, window_params = [{transform_indices = @transform_0, window_bounds = array<i64: 4, 20>}, {transform_indices = @transform_1, window_bounds = array<i64: 4, 12>}, {transform_indices = @transform_2, window_bounds = array<i64: 4, 128>}, {pipeline_mode = #tpu.pipeline_mode<synchronous>, transform_indices = @transform_3, window_bounds = array<i64: 20, 128>}, {pipeline_mode = #tpu.pipeline_mode<synchronous>, transform_indices = @transform_4, window_bounds = array<i64: 12, 128>}, {pipeline_mode = #tpu.pipeline_mode<synchronous>, transform_indices = @transform_5, window_bounds = array<i64: 1, 128>}, {pipeline_mode = #tpu.pipeline_mode<synchronous>, transform_indices = @transform_6, window_bounds = array<i64: 128, 384>}, {pipeline_mode = #tpu.pipeline_mode<synchronous>, transform_indices = @transform_7, window_bounds = array<i64: 1, 384>}, {pipeline_mode = #tpu.pipeline_mode<synchronous>, transform_indices = @transform_8, window_bounds = array<i64: 128, 384>}, {pipeline_mode = #tpu.pipeline_mode<synchronous>, transform_indices = @transform_9, window_bounds = array<i64: 1, 384>}, {pipeline_mode = #tpu.pipeline_mode<synchronous>, transform_indices = @transform_10, window_bounds = array<i64: 128, 128>}, {pipeline_mode = #tpu.pipeline_mode<synchronous>, transform_indices = @transform_11, window_bounds = array<i64: 1, 128>}, {transform_indices = @transform_12, window_bounds = array<i64: 4, 128>}, {transform_indices = @transform_13, window_bounds = array<i64: 4, 128>}]} {
    %c0 = arith.constant 0 : index
    %c0_0 = arith.constant 0 : index
    %0 = vector.load %arg3[%c0, %c0_0] : memref<4x128xf32, #tpu.memory_space<vmem>>, vector<4x128xf32>
    %c0_1 = arith.constant 0 : index
    %c0_2 = arith.constant 0 : index
    %1 = vector.load %arg6[%c0_1, %c0_2] : memref<1x128xf32, #tpu.memory_space<vmem>>, vector<1x128xf32>
    %c0_3 = arith.constant 0 : index
    %c0_4 = arith.constant 0 : index
    %2 = vector.load %arg8[%c0_3, %c0_4] : memref<1x384xf32, #tpu.memory_space<vmem>>, vector<1x384xf32>
    %c0_5 = arith.constant 0 : index
    %c0_6 = arith.constant 0 : index
    %3 = vector.load %arg10[%c0_5, %c0_6] : memref<1x384xf32, #tpu.memory_space<vmem>>, vector<1x384xf32>
    %c0_7 = arith.constant 0 : index
    %c0_8 = arith.constant 0 : index
    %4 = vector.load %arg12[%c0_7, %c0_8] : memref<1x128xf32, #tpu.memory_space<vmem>>, vector<1x128xf32>
    %c0_9 = arith.constant 0 : index
    %c0_10 = arith.constant 0 : index
    %5 = vector.load %arg1[%c0_9, %c0_10] : memref<4x20xf32, #tpu.memory_space<vmem>>, vector<4x20xf32>
    %c0_11 = arith.constant 0 : index
    %c0_12 = arith.constant 0 : index
    %6 = vector.load %arg4[%c0_11, %c0_12] : memref<20x128xf32, #tpu.memory_space<vmem>>, vector<20x128xf32>
    %cst = arith.constant dense<0.000000e+00> : vector<4x128xf32>
    %7 = tpu.matmul %5, %6, %cst {dimension_numbers = #tpu.dot_dimension_numbers<[1], [0], [0], [1], [0, 0, 1, 1], [], []>} : vector<4x20xf32>, vector<20x128xf32>, vector<4x128xf32> -> vector<4x128xf32>
    %c0_13 = arith.constant 0 : index
    %c0_14 = arith.constant 0 : index
    %8 = vector.load %arg2[%c0_13, %c0_14] : memref<4x12xf32, #tpu.memory_space<vmem>>, vector<4x12xf32>
    %c0_15 = arith.constant 0 : index
    %c0_16 = arith.constant 0 : index
    %9 = vector.load %arg5[%c0_15, %c0_16] : memref<12x128xf32, #tpu.memory_space<vmem>>, vector<12x128xf32>
    %cst_17 = arith.constant dense<0.000000e+00> : vector<4x128xf32>
    %10 = tpu.matmul %8, %9, %cst_17 {dimension_numbers = #tpu.dot_dimension_numbers<[1], [0], [0], [1], [0, 0, 1, 1], [], []>} : vector<4x12xf32>, vector<12x128xf32>, vector<4x128xf32> -> vector<4x128xf32>
    %11 = arith.addf %7, %10 : vector<4x128xf32>
    %12 = vector.broadcast %1 : vector<1x128xf32> to vector<4x128xf32>
    %13 = arith.addf %11, %12 : vector<4x128xf32>
    %cst_18 = arith.constant 0.000000e+00 : f32
    %14 = vector.broadcast %cst_18 : f32 to vector<4x128xf32>
    %15 = arith.maximumf %13, %14 : vector<4x128xf32>
    %c0_19 = arith.constant 0 : index
    %c0_20 = arith.constant 0 : index
    %16 = vector.load %arg7[%c0_19, %c0_20] : memref<128x384xf32, #tpu.memory_space<vmem>>, vector<128x384xf32>
    %cst_21 = arith.constant dense<0.000000e+00> : vector<4x384xf32>
    %17 = tpu.matmul %15, %16, %cst_21 {dimension_numbers = #tpu.dot_dimension_numbers<[1], [0], [0], [1], [0, 0, 1, 1], [], []>} : vector<4x128xf32>, vector<128x384xf32>, vector<4x384xf32> -> vector<4x384xf32>
    %18 = vector.broadcast %2 : vector<1x384xf32> to vector<4x384xf32>
    %19 = arith.addf %17, %18 : vector<4x384xf32>
    %c0_22 = arith.constant 0 : index
    %c0_23 = arith.constant 0 : index
    %20 = vector.load %arg9[%c0_22, %c0_23] : memref<128x384xf32, #tpu.memory_space<vmem>>, vector<128x384xf32>
    %cst_24 = arith.constant dense<0.000000e+00> : vector<4x384xf32>
    %21 = tpu.matmul %0, %20, %cst_24 {dimension_numbers = #tpu.dot_dimension_numbers<[1], [0], [0], [1], [0, 0, 1, 1], [], []>} : vector<4x128xf32>, vector<128x384xf32>, vector<4x384xf32> -> vector<4x384xf32>
    %22 = vector.broadcast %3 : vector<1x384xf32> to vector<4x384xf32>
    %23 = arith.addf %21, %22 : vector<4x384xf32>
    %24 = vector.extract_strided_slice %19 {offsets = [0, 0], sizes = [4, 128], strides = [1, 1]} : vector<4x384xf32> to vector<4x128xf32>
    %25 = vector.extract_strided_slice %19 {offsets = [0, 128], sizes = [4, 128], strides = [1, 1]} : vector<4x384xf32> to vector<4x128xf32>
    %26 = vector.extract_strided_slice %19 {offsets = [0, 256], sizes = [4, 128], strides = [1, 1]} : vector<4x384xf32> to vector<4x128xf32>
    %27 = vector.extract_strided_slice %23 {offsets = [0, 0], sizes = [4, 128], strides = [1, 1]} : vector<4x384xf32> to vector<4x128xf32>
    %28 = vector.extract_strided_slice %23 {offsets = [0, 128], sizes = [4, 128], strides = [1, 1]} : vector<4x384xf32> to vector<4x128xf32>
    %29 = vector.extract_strided_slice %23 {offsets = [0, 256], sizes = [4, 128], strides = [1, 1]} : vector<4x384xf32> to vector<4x128xf32>
    %30 = arith.addf %24, %27 : vector<4x128xf32>
    %31 = arith.negf %30 : vector<4x128xf32>
    %32 = math.exp %31 : vector<4x128xf32>
    %cst_25 = arith.constant 1.000000e+00 : f32
    %33 = vector.broadcast %cst_25 : f32 to vector<4x128xf32>
    %34 = arith.addf %33, %32 : vector<4x128xf32>
    %35 = arith.divf %33, %34 : vector<4x128xf32>
    %36 = arith.addf %25, %28 : vector<4x128xf32>
    %37 = arith.negf %36 : vector<4x128xf32>
    %38 = math.exp %37 : vector<4x128xf32>
    %cst_26 = arith.constant 1.000000e+00 : f32
    %39 = vector.broadcast %cst_26 : f32 to vector<4x128xf32>
    %40 = arith.addf %39, %38 : vector<4x128xf32>
    %41 = arith.divf %39, %40 : vector<4x128xf32>
    %42 = arith.mulf %35, %29 : vector<4x128xf32>
    %43 = arith.addf %26, %42 : vector<4x128xf32>
    %44 = math.tanh %43 : vector<4x128xf32>
    %cst_27 = arith.constant 1.000000e+00 : f32
    %45 = vector.broadcast %cst_27 : f32 to vector<4x128xf32>
    %46 = arith.subf %45, %41 : vector<4x128xf32>
    %47 = arith.mulf %46, %44 : vector<4x128xf32>
    %48 = arith.mulf %41, %0 : vector<4x128xf32>
    %49 = arith.addf %47, %48 : vector<4x128xf32>
    %c0_28 = arith.constant 0 : index
    %c0_29 = arith.constant 0 : index
    %50 = vector.load %arg14[%c0_28, %c0_29] : memref<4x128xf32, #tpu.memory_space<vmem>>, vector<4x128xf32>
    tpu.vector_store %arg14[%c0_28, %c0_29], %49 {strides = array<i32>} : memref<4x128xf32, #tpu.memory_space<vmem>>, vector<4x128xf32>,
    %c0_30 = arith.constant 0 : index
    %c0_31 = arith.constant 0 : index
    %51 = vector.load %arg11[%c0_30, %c0_31] : memref<128x128xf32, #tpu.memory_space<vmem>>, vector<128x128xf32>
    %cst_32 = arith.constant dense<0.000000e+00> : vector<4x128xf32>
    %52 = tpu.matmul %49, %51, %cst_32 {dimension_numbers = #tpu.dot_dimension_numbers<[1], [0], [0], [1], [0, 0, 1, 1], [], []>} : vector<4x128xf32>, vector<128x128xf32>, vector<4x128xf32> -> vector<4x128xf32>
    %53 = vector.broadcast %4 : vector<1x128xf32> to vector<4x128xf32>
    %54 = arith.addf %52, %53 : vector<4x128xf32>
    %c0_33 = arith.constant 0 : index
    %c0_34 = arith.constant 0 : index
    %55 = vector.load %arg13[%c0_33, %c0_34] : memref<4x128xf32, #tpu.memory_space<vmem>>, vector<4x128xf32>
    tpu.vector_store %arg13[%c0_33, %c0_34], %54 {strides = array<i32>} : memref<4x128xf32, #tpu.memory_space<vmem>>, vector<4x128xf32>,
    return
  }
  func.func @transform_0(%arg0: i32) -> (i32, i32) {
    %c0_i32 = arith.constant 0 : i32
    %c0_i32_0 = arith.constant 0 : i32
    return %arg0, %c0_i32 : i32, i32
  }
  func.func @transform_1(%arg0: i32) -> (i32, i32) {
    %c0_i32 = arith.constant 0 : i32
    %c0_i32_0 = arith.constant 0 : i32
    return %arg0, %c0_i32 : i32, i32
  }
  func.func @transform_2(%arg0: i32) -> (i32, i32) {
    %c0_i32 = arith.constant 0 : i32
    %c0_i32_0 = arith.constant 0 : i32
    return %arg0, %c0_i32 : i32, i32
  }
  func.func @transform_3(%arg0: i32) -> (i32, i32) {
    %c0_i32 = arith.constant 0 : i32
    %c0_i32_0 = arith.constant 0 : i32
    %c0_i32_1 = arith.constant 0 : i32
    return %c0_i32, %c0_i32_0 : i32, i32
  }
  func.func @transform_4(%arg0: i32) -> (i32, i32) {
    %c0_i32 = arith.constant 0 : i32
    %c0_i32_0 = arith.constant 0 : i32
    %c0_i32_1 = arith.constant 0 : i32
    return %c0_i32, %c0_i32_0 : i32, i32
  }
  func.func @transform_5(%arg0: i32) -> (i32, i32) {
    %c0_i32 = arith.constant 0 : i32
    %c0_i32_0 = arith.constant 0 : i32
    %c0_i32_1 = arith.constant 0 : i32
    return %c0_i32, %c0_i32_0 : i32, i32
  }
  func.func @transform_6(%arg0: i32) -> (i32, i32) {
    %c0_i32 = arith.constant 0 : i32
    %c0_i32_0 = arith.constant 0 : i32
    %c0_i32_1 = arith.constant 0 : i32
    return %c0_i32, %c0_i32_0 : i32, i32
  }
  func.func @transform_7(%arg0: i32) -> (i32, i32) {
    %c0_i32 = arith.constant 0 : i32
    %c0_i32_0 = arith.constant 0 : i32
    %c0_i32_1 = arith.constant 0 : i32
    return %c0_i32, %c0_i32_0 : i32, i32
  }
  func.func @transform_8(%arg0: i32) -> (i32, i32) {
    %c0_i32 = arith.constant 0 : i32
    %c0_i32_0 = arith.constant 0 : i32
    %c0_i32_1 = arith.constant 0 : i32
    return %c0_i32, %c0_i32_0 : i32, i32
  }
  func.func @transform_9(%arg0: i32) -> (i32, i32) {
    %c0_i32 = arith.constant 0 : i32
    %c0_i32_0 = arith.constant 0 : i32
    %c0_i32_1 = arith.constant 0 : i32
    return %c0_i32, %c0_i32_0 : i32, i32
  }
  func.func @transform_10(%arg0: i32) -> (i32, i32) {
    %c0_i32 = arith.constant 0 : i32
    %c0_i32_0 = arith.constant 0 : i32
    %c0_i32_1 = arith.constant 0 : i32
    return %c0_i32, %c0_i32_0 : i32, i32
  }
  func.func @transform_11(%arg0: i32) -> (i32, i32) {
    %c0_i32 = arith.constant 0 : i32
    %c0_i32_0 = arith.constant 0 : i32
    %c0_i32_1 = arith.constant 0 : i32
    return %c0_i32, %c0_i32_0 : i32, i32
  }
  func.func @transform_12(%arg0: i32) -> (i32, i32) {
    %c0_i32 = arith.constant 0 : i32
    %c0_i32_0 = arith.constant 0 : i32
    return %arg0, %c0_i32 : i32, i32
  }
  func.func @transform_13(%arg0: i32) -> (i32, i32) {
    %c0_i32 = arith.constant 0 : i32
    %c0_i32_0 = arith.constant 0 : i32
    return %arg0, %c0_i32 : i32, i32
  }
}

</mosaic_0001>

<llo_original>
// kernel: tpu_custom_call.1
$region0: #{tpu_custom_call.1}
  #allocation0 [shape = 'u32[]', space=smem, size = 0x4, offset = 0x4, fixed_abs, tag = 'smem constant byte address 0x4 - core index']
  #allocation1 [shape = 'u32[144,128]{1,0:T(1,128)}', space=vmem, size = 0x12000, scoped, tag = 'internal scratch']
  %s0 = inlined_call_operand.vmem [shape: f32[4,20], index: 0, kind: input, shape index: {}]
  %s1 = inlined_call_operand.vmem [shape: f32[4,12], index: 1, kind: input, shape index: {}]
  %s2 = inlined_call_operand.hbm [shape: f32[4,128], index: 2, kind: input, shape index: {}, may-alias: {2,13}]
  %s3 = inlined_call_operand.vmem [shape: f32[20,128], index: 3, kind: input, shape index: {}]
  %s4 = inlined_call_operand.hbm [shape: f32[12,128], index: 4, kind: input, shape index: {}]
  %s5 = inlined_call_operand.vmem [shape: f32[1,128], index: 5, kind: input, shape index: {}]
  %s6 = inlined_call_operand.hbm [shape: f32[128,384], index: 6, kind: input, shape index: {}]
  %s7 = inlined_call_operand.hbm [shape: f32[1,384], index: 7, kind: input, shape index: {}]
  %s8 = inlined_call_operand.hbm [shape: f32[128,384], index: 8, kind: input, shape index: {}]
  %s9 = inlined_call_operand.hbm [shape: f32[1,384], index: 9, kind: input, shape index: {}]
  %s10 = inlined_call_operand.hbm [shape: f32[128,128], index: 10, kind: input, shape index: {}]
  %s11 = inlined_call_operand.hbm [shape: f32[1,128], index: 11, kind: input, shape index: {}]
  %s12 = inlined_call_operand.hbm [shape: f32[4,128], index: 12, kind: output, shape index: {0}]
  %s13 = inlined_call_operand.hbm [shape: f32[4,128], index: 13, kind: output, shape index: {1}, may-alias: {2,13}]
  %14 = xla_tuple %s12, %s13
  %s15 = sld [smem:[#allocation0]]
  $region98: #{tpu_custom_call.1} parent=0
    _
  %s17 = ssub.s32 1, %s15
  %s18 = scalar_select 0, %s17, %s15
  $region1: #{tpu_custom_call.1} parent=0
    #allocation2 [shape = 'u8[2048]{0}', space=vmem, size = 0x800, scoped, tag = 'input window, operand 2, single buffered']
    #allocation3 [shape = 's32[1]{0}', space=sflag, size = 0x4, scoped, tag = 'scoped memory for tpu_custom_call.1']
    #allocation4 [shape = 's32[1]{0}', space=sflag, size = 0x4, scoped, tag = 'scoped memory for tpu_custom_call.1']
    #allocation5 [shape = 'u8[8192]{0}', space=vmem, size = 0x2000, scoped, tag = 'input window, operand 4, single buffered']
    #allocation6 [shape = 's32[1]{0}', space=sflag, size = 0x4, scoped, tag = 'scoped memory for tpu_custom_call.1']
    #allocation7 [shape = 'u8[196608]{0}', space=vmem, size = 0x30000, scoped, tag = 'input window, operand 6, single buffered']
    #allocation8 [shape = 'u8[1536]{0}', space=vmem, size = 0x800, scoped, tag = 'input window, operand 7, single buffered']
    #allocation9 [shape = 's32[1]{0}', space=sflag, size = 0x4, scoped, tag = 'scoped memory for tpu_custom_call.1']
    #allocation10 [shape = 'u8[196608]{0}', space=vmem, size = 0x30000, scoped, tag = 'input window, operand 8, single buffered']
    #allocation11 [shape = 'u8[1536]{0}', space=vmem, size = 0x800, scoped, tag = 'input window, operand 9, single buffered']
    #allocation12 [shape = 's32[1]{0}', space=sflag, size = 0x4, scoped, tag = 'scoped memory for tpu_custom_call.1']
    #allocation13 [shape = 'u8[65536]{0}', space=vmem, size = 0x10000, scoped, tag = 'input window, operand 10, single buffered']
    #allocation14 [shape = 'u8[512]{0}', space=vmem, size = 0x400, scoped, tag = 'input window, operand 11, single buffered']
    #allocation15 [shape = 's32[1]{0}', space=sflag, size = 0x4, scoped, tag = 'scoped memory for tpu_custom_call.1']
    #allocation16 [shape = 'u8[2048]{0}', space=vmem, size = 0x800, scoped, tag = 'output window, operand 0, single buffered']
    #allocation17 [shape = 'u8[2048]{0}', space=vmem, size = 0x800, scoped, tag = 'output window, operand 1, single buffered']
    #allocation18 [shape = 's32[1]{0}', space=sflag, size = 0x4, scoped, tag = 'scoped memory for tpu_custom_call.1']
    %19 = vsyncpa [#allocation3], 0
    %20 = vsyncpa [#allocation6], 0
    %21 = vsyncpa [#allocation9], 0
    %22 = vsyncpa [#allocation12], 0
    %23 = vsyncpa [#allocation15], 0
    %24 = vsyncpa [#allocation4], 0
    %25 = vsyncpa [#allocation18], 0
    // Predicated region
    $region2: #{tpu_custom_call.1} parent=1 // pred_check
      _
    $region3: #{tpu_custom_call.1} parent=1 // pred_check_branch
      %27 = sbr.rel (0) target = $region5
    $region4: #{tpu_custom_call.1} parent=1 // pred_region
      _
    $region5: #{tpu_custom_call.1} parent=1 // pred_fallthru
      _
    // Predicated region
    $region6: #{tpu_custom_call.1} parent=1 // pred_check
      _
    $region7: #{tpu_custom_call.1} parent=1 // pred_check_branch
      %29 = sbr.rel (0) target = $region9
    $region8: #{tpu_custom_call.1} parent=1 // pred_region
      _
    $region9: #{tpu_custom_call.1} parent=1 // pred_fallthru
      _
    // Predicated region
    $region10: #{tpu_custom_call.1} parent=1 // pred_check
      _
    $region11: #{tpu_custom_call.1} parent=1 // pred_check_branch
      %31 = sbr.rel (0) target = $region13
    $region12: #{tpu_custom_call.1} parent=1 // pred_region
      %s33 = ssub.s32 64, 64
      %34 = vsyncadd [#allocation3], %s33
      %s36 = sshll.u32 [#allocation2], 4
      %s37 = int_to_ptr.vmem [resolvable:$true] %s36
      %39 = dma.hbm_to_vmem [thread:$0]  %s2, 64, %s37, [#allocation3]
    $region13: #{tpu_custom_call.1} parent=1 // pred_fallthru
      _
    // Predicated region
    $region14: #{tpu_custom_call.1} parent=1 // pred_check
      _
    $region15: #{tpu_custom_call.1} parent=1 // pred_check_branch
      %41 = sbr.rel (0) target = $region17
    $region16: #{tpu_custom_call.1} parent=1 // pred_region
      _
    $region17: #{tpu_custom_call.1} parent=1 // pred_fallthru
      _
    // Predicated region
    $region18: #{tpu_custom_call.1} parent=1 // pred_check
      _
    $region19: #{tpu_custom_call.1} parent=1 // pred_check_branch
      %43 = sbr.rel (0) target = $region21
    $region20: #{tpu_custom_call.1} parent=1 // pred_region
      %s45 = ssub.s32 256, 256
      %46 = vsyncadd [#allocation6], %s45
      %s47 = sshll.u32 [#allocation5], 4
      %s48 = int_to_ptr.vmem [resolvable:$true] %s47
      %53 = dma.hbm_to_vmem [thread:$0]  %s4, 256, %s48, [#allocation6], 128, 128, 8
    $region21: #{tpu_custom_call.1} parent=1 // pred_fallthru
      _
    // Predicated region
    $region22: #{tpu_custom_call.1} parent=1 // pred_check
      _
    $region23: #{tpu_custom_call.1} parent=1 // pred_check_branch
      %55 = sbr.rel (0) target = $region25
    $region24: #{tpu_custom_call.1} parent=1 // pred_region
      _
    $region25: #{tpu_custom_call.1} parent=1 // pred_fallthru
      _
    // Predicated region
    $region26: #{tpu_custom_call.1} parent=1 // pred_check
      _
    $region27: #{tpu_custom_call.1} parent=1 // pred_check_branch
      %57 = sbr.rel (0) target = $region29
    $region28: #{tpu_custom_call.1} parent=1 // pred_region
      %s59 = ssub.s32 6144, 6144
      %60 = vsyncadd [#allocation6], %s59
      %s61 = sshll.u32 [#allocation7], 4
      %s62 = int_to_ptr.vmem [resolvable:$true] %s61
      %67 = dma.hbm_to_vmem [thread:$0]  %s6, 6144, %s62, [#allocation6], 384, 384, 24
    $region29: #{tpu_custom_call.1} parent=1 // pred_fallthru
      _
    // Predicated region
    $region30: #{tpu_custom_call.1} parent=1 // pred_check
      _
    $region31: #{tpu_custom_call.1} parent=1 // pred_check_branch
      %69 = sbr.rel (0) target = $region33
    $region32: #{tpu_custom_call.1} parent=1 // pred_region
      %s71 = ssub.s32 48, 48
      %72 = vsyncadd [#allocation9], %s71
      %s74 = sshll.u32 [#allocation8], 4
      %s75 = int_to_ptr.vmem [resolvable:$true] %s74
      %77 = dma.hbm_to_vmem [thread:$0]  %s7, 48, %s75, [#allocation9]
    $region33: #{tpu_custom_call.1} parent=1 // pred_fallthru
      _
    // Predicated region
    $region34: #{tpu_custom_call.1} parent=1 // pred_check
      _
    $region35: #{tpu_custom_call.1} parent=1 // pred_check_branch
      %79 = sbr.rel (0) target = $region37
    $region36: #{tpu_custom_call.1} parent=1 // pred_region
      %s81 = ssub.s32 6144, 6144
      %82 = vsyncadd [#allocation9], %s81
      %s83 = sshll.u32 [#allocation10], 4
      %s84 = int_to_ptr.vmem [resolvable:$true] %s83
      %89 = dma.hbm_to_vmem [thread:$0]  %s8, 6144, %s84, [#allocation9], 384, 384, 24
    $region37: #{tpu_custom_call.1} parent=1 // pred_fallthru
      _
    // Predicated region
    $region38: #{tpu_custom_call.1} parent=1 // pred_check
      _
    $region39: #{tpu_custom_call.1} parent=1 // pred_check_branch
      %91 = sbr.rel (0) target = $region41
    $region40: #{tpu_custom_call.1} parent=1 // pred_region
      %s93 = ssub.s32 48, 48
      %94 = vsyncadd [#allocation12], %s93
      %s96 = sshll.u32 [#allocation11], 4
      %s97 = int_to_ptr.vmem [resolvable:$true] %s96
      %99 = dma.hbm_to_vmem [thread:$0]  %s9, 48, %s97, [#allocation12]
    $region41: #{tpu_custom_call.1} parent=1 // pred_fallthru
      _
    // Predicated region
    $region42: #{tpu_custom_call.1} parent=1 // pred_check
      _
    $region43: #{tpu_custom_call.1} parent=1 // pred_check_branch
      %101 = sbr.rel (0) target = $region45
    $region44: #{tpu_custom_call.1} parent=1 // pred_region
      %s103 = ssub.s32 2048, 2048
      %104 = vsyncadd [#allocation12], %s103
      %s105 = sshll.u32 [#allocation13], 4
      %s106 = int_to_ptr.vmem [resolvable:$true] %s105
      %111 = dma.hbm_to_vmem [thread:$0]  %s10, 2048, %s106, [#allocation12], 128, 128, 8
    $region45: #{tpu_custom_call.1} parent=1 // pred_fallthru
      _
    // Predicated region
    $region46: #{tpu_custom_call.1} parent=1 // pred_check
      _
    $region47: #{tpu_custom_call.1} parent=1 // pred_check_branch
      %113 = sbr.rel (0) target = $region49
    $region48: #{tpu_custom_call.1} parent=1 // pred_region
      %s115 = ssub.s32 16, 16
      %116 = vsyncadd [#allocation15], %s115
      %s118 = sshll.u32 [#allocation14], 4
      %s119 = int_to_ptr.vmem [resolvable:$true] %s118
      %121 = dma.hbm_to_vmem [thread:$0]  %s11, 16, %s119, [#allocation15]
    $region49: #{tpu_custom_call.1} parent=1 // pred_fallthru
      _
    // Predicated region
    $region50: #{tpu_custom_call.1} parent=1 // pred_check
      _
    $region51: #{tpu_custom_call.1} parent=1 // pred_check_branch
      %123 = sbr.rel (0) target = $region53
    $region52: #{tpu_custom_call.1} parent=1 // pred_region
      %124 = dma.done [#allocation3], 64
    $region53: #{tpu_custom_call.1} parent=1 // pred_fallthru
      _
    // Predicated region
    $region54: #{tpu_custom_call.1} parent=1 // pred_check
      _
    $region55: #{tpu_custom_call.1} parent=1 // pred_check_branch
      %126 = sbr.rel (0) target = $region57
    $region56: #{tpu_custom_call.1} parent=1 // pred_region
      %127 = dma.done [#allocation6], 256
    $region57: #{tpu_custom_call.1} parent=1 // pred_fallthru
      _
    // Predicated region
    $region58: #{tpu_custom_call.1} parent=1 // pred_check
      _
    $region59: #{tpu_custom_call.1} parent=1 // pred_check_branch
      %129 = sbr.rel (0) target = $region61
    $region60: #{tpu_custom_call.1} parent=1 // pred_region
      %130 = dma.done [#allocation6], 6144
    $region61: #{tpu_custom_call.1} parent=1 // pred_fallthru
      _
    // Predicated region
    $region62: #{tpu_custom_call.1} parent=1 // pred_check
      _
    $region63: #{tpu_custom_call.1} parent=1 // pred_check_branch
      %132 = sbr.rel (0) target = $region65
    $region64: #{tpu_custom_call.1} parent=1 // pred_region
      %133 = dma.done [#allocation9], 48
    $region65: #{tpu_custom_call.1} parent=1 // pred_fallthru
      _
    // Predicated region
    $region66: #{tpu_custom_call.1} parent=1 // pred_check
      _
    $region67: #{tpu_custom_call.1} parent=1 // pred_check_branch
      %135 = sbr.rel (0) target = $region69
    $region68: #{tpu_custom_call.1} parent=1 // pred_region
      %136 = dma.done [#allocation9], 6144
    $region69: #{tpu_custom_call.1} parent=1 // pred_fallthru
      _
    // Predicated region
    $region70: #{tpu_custom_call.1} parent=1 // pred_check
      _
    $region71: #{tpu_custom_call.1} parent=1 // pred_check_branch
      %138 = sbr.rel (0) target = $region73
    $region72: #{tpu_custom_call.1} parent=1 // pred_region
      %139 = dma.done [#allocation12], 48
    $region73: #{tpu_custom_call.1} parent=1 // pred_fallthru
      _
    // Predicated region
    $region74: #{tpu_custom_call.1} parent=1 // pred_check
      _
    $region75: #{tpu_custom_call.1} parent=1 // pred_check_branch
      %141 = sbr.rel (0) target = $region77
    $region76: #{tpu_custom_call.1} parent=1 // pred_region
      %142 = dma.done [#allocation12], 2048
    $region77: #{tpu_custom_call.1} parent=1 // pred_fallthru
      _
    // Predicated region
    $region78: #{tpu_custom_call.1} parent=1 // pred_check
      _
    $region79: #{tpu_custom_call.1} parent=1 // pred_check_branch
      %144 = sbr.rel (0) target = $region81
    $region80: #{tpu_custom_call.1} parent=1 // pred_region
      %145 = dma.done [#allocation15], 16
    $region81: #{tpu_custom_call.1} parent=1 // pred_fallthru
      _
    %v146 = vld [vmem:[#allocation2] sm:$0xf]
    %v147 = vld [vmem:[%s5] sm:$0x1]
    %v148 = vld [vmem:[#allocation8] sm:$0x7]
    %v149 = vld [vmem:[#allocation11] sm:$0x7]
    %v150 = vld [vmem:[#allocation14] sm:$0x1]
    %v151 = vld [vmem:[%s0] sm:$0xf]
    %v152 = vld [vmem:[%s3] sm:$0xff]
    %v153 = vld [vmem:[%s3 + $0x8] sm:$0xff]
    %v154 = vld [vmem:[%s3 + $0x10] sm:$0xf]
    %v155 = vld [vmem:[%s1] sm:$0xf]
    %v156 = vld [vmem:[#allocation5] sm:$0xff]
    %v157 = vld [vmem:[#allocation5 + $0x8] sm:$0xf]
    %vm158 = vcmask 97280
    %v160 = vsel %vm158, %v155, 0
    %vm162 = vcmask 1043456
    %v164 = vsel %vm162, %v157, 0
    %166 = vmatprep.subr.mxu0 0.0
    %167 = vmatpush1.msra.mxu0 %v156
    %168 = vmatprep.subr.mxu0 0.0
    %169 = vmatpush1.msra.mxu0 %v164
    %170 = vmatprep.subr.mxu0 0.0
    %171 = vmatpush1.msra.mxu0 0.0
    %172 = vmatprep.subr.mxu0 0.0
    %173 = vmatpush1.msra.mxu0 0.0
    %174 = vmatprep.subr.mxu0 0.0
    %175 = vmatpush1.msra.mxu0 0.0
    %176 = vmatprep.subr.mxu0 0.0
    %177 = vmatpush1.msra.mxu0 0.0
    %178 = vmatprep.subr.mxu0 0.0
    %179 = vmatpush1.msra.mxu0 0.0
    %180 = vmatprep.subr.mxu0 0.0
    %181 = vmatpush1.msra.mxu0 0.0
    %182 = vmatprep.subr.mxu0 0.0
    %183 = vmatpush1.msra.mxu0 0.0
    %184 = vmatprep.subr.mxu0 0.0
    %185 = vmatpush1.msra.mxu0 0.0
    %186 = vmatprep.subr.mxu0 0.0
    %187 = vmatpush1.msra.mxu0 0.0
    %188 = vmatprep.subr.mxu0 0.0
    %189 = vmatpush1.msra.mxu0 0.0
    %190 = vmatprep.subr.mxu0 0.0
    %191 = vmatpush1.msra.mxu0 0.0
    %192 = vmatprep.subr.mxu0 0.0
    %193 = vmatpush1.msra.mxu0 0.0
    %194 = vmatprep.subr.mxu0 0.0
    %195 = vmatpush1.msra.mxu0 0.0
    %196 = vmatprep.subr.mxu0 0.0
    %197 = vmatpush1.msra.mxu0 0.0
    %198 = vmatprep.subr.mxu0 0.0
    %199 = vmatpush1.msra.mxu0 0.0
    %200 = vmatprep.subr.mxu0 0.0
    %201 = vmatpush1.msra.mxu0 0.0
    %202 = vmatprep.subr.mxu0 0.0
    %203 = vmatpush1.msra.mxu0 0.0
    %204 = vmatprep.subr.mxu0 0.0
    %205 = vmatpush1.msra.mxu0 0.0
    %206 = vmatprep.subr.mxu0 0.0
    %207 = vmatpush1.msra.mxu0 0.0
    %208 = vmatprep.subr.mxu0 0.0
    %209 = vmatpush1.msra.mxu0 0.0
    %210 = vmatprep.subr.mxu0 0.0
    %211 = vmatpush1.msra.mxu0 0.0
    %212 = vmatprep.subr.mxu0 0.0
    %213 = vmatpush1.msra.mxu0 0.0
    %214 = vmatprep.subr.mxu0 0.0
    %215 = vmatpush1.msra.mxu0 0.0
    %216 = vmatprep.subr.mxu0 0.0
    %217 = vmatpush1.msra.mxu0 0.0
    %218 = vmatprep.subr.mxu0 0.0
    %219 = vmatpush1.msra.mxu0 0.0
    %220 = vmatprep.subr.mxu0 0.0
    %221 = vmatpush1.msra.mxu0 0.0
    %222 = vmatprep.subr.mxu0 0.0
    %223 = vmatpush1.msra.mxu0 0.0
    %224 = vmatprep.subr.mxu0 0.0
    %225 = vmatpush1.msra.mxu0 0.0
    %226 = vmatprep.subr.mxu0 0.0
    %227 = vmatpush1.msra.mxu0 0.0
    %228 = vmatprep.subr.mxu0 0.0
    %229 = vmatpush1.msra.mxu0 0.0
    %230 = vmatprep.mubr.f32.mxu0 0.0
    %231 = vmatmul.mubr.f32.gmra.mrb[0].mxu0 %v160
    %v232 = vpop.f32.mrb[0].mxu0
    %v233 = vadd.f32 0.0, %v232
    %v234 = vpop.f32.mrb[0].mxu0
    %235 = vdwg.mxu0
    %vm236 = vcmask 162816
    %v238 = vsel %vm236, %v151, 0
    %v241 = vsel %vm162, %v154, 0
    %243 = vmatprep.subr.mxu0 0.0
    %244 = vmatpush1.msra.mxu0 %v152
    %245 = vmatprep.subr.mxu0 0.0
    %246 = vmatpush1.msra.mxu0 %v153
    %247 = vmatprep.subr.mxu0 0.0
    %248 = vmatpush1.msra.mxu0 %v241
    %249 = vmatprep.subr.mxu0 0.0
    %250 = vmatpush1.msra.mxu0 0.0
    %251 = vmatprep.subr.mxu0 0.0
    %252 = vmatpush1.msra.mxu0 0.0
    %253 = vmatprep.subr.mxu0 0.0
    %254 = vmatpush1.msra.mxu0 0.0
    %255 = vmatprep.subr.mxu0 0.0
    %256 = vmatpush1.msra.mxu0 0.0
    %257 = vmatprep.subr.mxu0 0.0
    %258 = vmatpush1.msra.mxu0 0.0
    %259 = vmatprep.subr.mxu0 0.0
    %260 = vmatpush1.msra.mxu0 0.0
    %261 = vmatprep.subr.mxu0 0.0
    %262 = vmatpush1.msra.mxu0 0.0
    %263 = vmatprep.subr.mxu0 0.0
    %264 = vmatpush1.msra.mxu0 0.0
    %265 = vmatprep.subr.mxu0 0.0
    %266 = vmatpush1.msra.mxu0 0.0
    %267 = vmatprep.subr.mxu0 0.0
    %268 = vmatpush1.msra.mxu0 0.0
    %269 = vmatprep.subr.mxu0 0.0
    %270 = vmatpush1.msra.mxu0 0.0
    %271 = vmatprep.subr.mxu0 0.0
    %272 = vmatpush1.msra.mxu0 0.0
    %273 = vmatprep.subr.mxu0 0.0
    %274 = vmatpush1.msra.mxu0 0.0
    %275 = vmatprep.subr.mxu0 0.0
    %276 = vmatpush1.msra.mxu0 0.0
    %277 = vmatprep.subr.mxu0 0.0
    %278 = vmatpush1.msra.mxu0 0.0
    %279 = vmatprep.subr.mxu0 0.0
    %280 = vmatpush1.msra.mxu0 0.0
    %281 = vmatprep.subr.mxu0 0.0
    %282 = vmatpush1.msra.mxu0 0.0
    %283 = vmatprep.subr.mxu0 0.0
    %284 = vmatpush1.msra.mxu0 0.0
    %285 = vmatprep.subr.mxu0 0.0
    %286 = vmatpush1.msra.mxu0 0.0
    %287 = vmatprep.subr.mxu0 0.0
    %288 = vmatpush1.msra.mxu0 0.0
    %289 = vmatprep.subr.mxu0 0.0
    %290 = vmatpush1.msra.mxu0 0.0
    %291 = vmatprep.subr.mxu0 0.0
    %292 = vmatpush1.msra.mxu0 0.0
    %293 = vmatprep.subr.mxu0 0.0
    %294 = vmatpush1.msra.mxu0 0.0
    %295 = vmatprep.subr.mxu0 0.0
    %296 = vmatpush1.msra.mxu0 0.0
    %297 = vmatprep.subr.mxu0 0.0
    %298 = vmatpush1.msra.mxu0 0.0
    %299 = vmatprep.subr.mxu0 0.0
    %300 = vmatpush1.msra.mxu0 0.0
    %301 = vmatprep.subr.mxu0 0.0
    %302 = vmatpush1.msra.mxu0 0.0
    %303 = vmatprep.subr.mxu0 0.0
    %304 = vmatpush1.msra.mxu0 0.0
    %305 = vmatprep.subr.mxu0 0.0
    %306 = vmatpush1.msra.mxu0 0.0
    %307 = vmatprep.mubr.f32.mxu0 0.0
    %308 = vmatmul.mubr.f32.gmra.mrb[0].mxu0 %v238
    %v309 = vpop.f32.mrb[0].mxu0
    %v310 = vadd.f32 %v233, %v309
    %v311 = vpop.f32.mrb[0].mxu0
    %312 = vdwg.mxu0
    %v314 = vlaneseq
    %v315 = vshrl.u32 %v314, 7
    %v316 = vsub.s32 0, %v315
    %v317 = vrot.slane %v147, %v316
    %v319 = vadd.f32 %v310, %v317
    %v320 = vmax.f32 %v319, 0.0
    %v321 = vld [vmem:[#allocation7] sm:$0xff]
    %v322 = vld [vmem:[#allocation7 + $0x8] sm:$0xff]
    %v323 = vld [vmem:[#allocation7 + $0x10] sm:$0xff]
    %v324 = vld [vmem:[#allocation7 + $0x18] sm:$0xff]
    %v325 = vld [vmem:[#allocation7 + $0x20] sm:$0xff]
    %v326 = vld [vmem:[#allocation7 + $0x28] sm:$0xff]
    %v327 = vld [vmem:[#allocation7 + $0x30] sm:$0xff]
    %v328 = vld [vmem:[#allocation7 + $0x38] sm:$0xff]
    %v329 = vld [vmem:[#allocation7 + $0x40] sm:$0xff]
    %v330 = vld [vmem:[#allocation7 + $0x48] sm:$0xff]
    %v331 = vld [vmem:[#allocation7 + $0x50] sm:$0xff]
    %v332 = vld [vmem:[#allocation7 + $0x58] sm:$0xff]
    %v333 = vld [vmem:[#allocation7 + $0x60] sm:$0xff]
    %v334 = vld [vmem:[#allocation7 + $0x68] sm:$0xff]
    %v335 = vld [vmem:[#allocation7 + $0x70] sm:$0xff]
    %v336 = vld [vmem:[#allocation7 + $0x78] sm:$0xff]
    %v337 = vld [vmem:[#allocation7 + $0x80] sm:$0xff]
    %v338 = vld [vmem:[#allocation7 + $0x88] sm:$0xff]
    %v339 = vld [vmem:[#allocation7 + $0x90] sm:$0xff]
    %v340 = vld [vmem:[#allocation7 + $0x98] sm:$0xff]
    %v341 = vld [vmem:[#allocation7 + $0xa0] sm:$0xff]
    %v342 = vld [vmem:[#allocation7 + $0xa8] sm:$0xff]
    %v343 = vld [vmem:[#allocation7 + $0xb0] sm:$0xff]
    %v344 = vld [vmem:[#allocation7 + $0xb8] sm:$0xff]
    %v345 = vld [vmem:[#allocation7 + $0xc0] sm:$0xff]
    %v346 = vld [vmem:[#allocation7 + $0xc8] sm:$0xff]
    %v347 = vld [vmem:[#allocation7 + $0xd0] sm:$0xff]
    %v348 = vld [vmem:[#allocation7 + $0xd8] sm:$0xff]
    %v349 = vld [vmem:[#allocation7 + $0xe0] sm:$0xff]
    %v350 = vld [vmem:[#allocation7 + $0xe8] sm:$0xff]
    %v351 = vld [vmem:[#allocation7 + $0xf0] sm:$0xff]
    %v352 = vld [vmem:[#allocation7 + $0xf8] sm:$0xff]
    %v353 = vld [vmem:[#allocation7 + $0x100] sm:$0xff]
    %v354 = vld [vmem:[#allocation7 + $0x108] sm:$0xff]
    %v355 = vld [vmem:[#allocation7 + $0x110] sm:$0xff]
    %v356 = vld [vmem:[#allocation7 + $0x118] sm:$0xff]
    %v357 = vld [vmem:[#allocation7 + $0x120] sm:$0xff]
    %v358 = vld [vmem:[#allocation7 + $0x128] sm:$0xff]
    %v359 = vld [vmem:[#allocation7 + $0x130] sm:$0xff]
    %v360 = vld [vmem:[#allocation7 + $0x138] sm:$0xff]
    %v361 = vld [vmem:[#allocation7 + $0x140] sm:$0xff]
    %v362 = vld [vmem:[#allocation7 + $0x148] sm:$0xff]
    %v363 = vld [vmem:[#allocation7 + $0x150] sm:$0xff]
    %v364 = vld [vmem:[#allocation7 + $0x158] sm:$0xff]
    %v365 = vld [vmem:[#allocation7 + $0x160] sm:$0xff]
    %v366 = vld [vmem:[#allocation7 + $0x168] sm:$0xff]
    %v367 = vld [vmem:[#allocation7 + $0x170] sm:$0xff]
    %v368 = vld [vmem:[#allocation7 + $0x178] sm:$0xff]
    %v370 = vlaneseq
    %v371 = vshrl.u32 %v370, 7
    %v372 = vsub.s32 0, %v371
    %v373 = vrot.slane %v148, %v372
    %v374 = vlaneseq
    %v375 = vshrl.u32 %v374, 7
    %v376 = vsub.s32 1, %v375
    %v377 = vrot.slane %v148, %v376
    %v378 = vlaneseq
    %v379 = vshrl.u32 %v378, 7
    %v380 = vsub.s32 2, %v379
    %v381 = vrot.slane %v148, %v380
    %385 = vmatprep.subr.mxu0 %v322
    %386 = vmatpush1.msra.mxu0 %v321
    %387 = vmatprep.subr.mxu0 %v325
    %388 = vmatpush1.msra.mxu0 %v324
    %389 = vmatprep.subr.mxu0 %v328
    %390 = vmatpush1.msra.mxu0 %v327
    %391 = vmatprep.subr.mxu0 %v331
    %392 = vmatpush1.msra.mxu0 %v330
    %393 = vmatprep.subr.mxu0 %v334
    %394 = vmatpush1.msra.mxu0 %v333
    %395 = vmatprep.subr.mxu0 %v337
    %396 = vmatpush1.msra.mxu0 %v336
    %397 = vmatprep.subr.mxu0 %v340
    %398 = vmatpush1.msra.mxu0 %v339
    %399 = vmatprep.subr.mxu0 %v343
    %400 = vmatpush1.msra.mxu0 %v342
    %401 = vmatprep.subr.mxu0 %v346
    %402 = vmatpush1.msra.mxu0 %v345
    %403 = vmatprep.subr.mxu0 %v349
    %404 = vmatpush1.msra.mxu0 %v348
    %405 = vmatprep.subr.mxu0 %v352
    %406 = vmatpush1.msra.mxu0 %v351
    %407 = vmatprep.subr.mxu0 %v355
    %408 = vmatpush1.msra.mxu0 %v354
    %409 = vmatprep.subr.mxu0 %v358
    %410 = vmatpush1.msra.mxu0 %v357
    %411 = vmatprep.subr.mxu0 %v361
    %412 = vmatpush1.msra.mxu0 %v360
    %413 = vmatprep.subr.mxu0 %v364
    %414 = vmatpush1.msra.mxu0 %v363
    %415 = vmatprep.subr.mxu0 %v367
    %416 = vmatpush1.msra.mxu0 %v366
    %417 = vmatprep.subr.mxu0 0.0
    %418 = vmatpush1.msra.mxu0 0.0
    %419 = vmatprep.subr.mxu0 0.0
    %420 = vmatpush1.msra.mxu0 0.0
    %421 = vmatprep.subr.mxu0 0.0
    %422 = vmatpush1.msra.mxu0 0.0
    %423 = vmatprep.subr.mxu0 0.0
    %424 = vmatpush1.msra.mxu0 0.0
    %425 = vmatprep.subr.mxu0 0.0
    %426 = vmatpush1.msra.mxu0 0.0
    %427 = vmatprep.subr.mxu0 0.0
    %428 = vmatpush1.msra.mxu0 0.0
    %429 = vmatprep.subr.mxu0 0.0
    %430 = vmatpush1.msra.mxu0 0.0
    %431 = vmatprep.subr.mxu0 0.0
    %432 = vmatpush1.msra.mxu0 0.0
    %433 = vmatprep.subr.mxu0 0.0
    %434 = vmatpush1.msra.mxu0 0.0
    %435 = vmatprep.subr.mxu0 0.0
    %436 = vmatpush1.msra.mxu0 0.0
    %437 = vmatprep.subr.mxu0 0.0
    %438 = vmatpush1.msra.mxu0 0.0
    %439 = vmatprep.subr.mxu0 0.0
    %440 = vmatpush1.msra.mxu0 0.0
    %441 = vmatprep.subr.mxu0 0.0
    %442 = vmatpush1.msra.mxu0 0.0
    %443 = vmatprep.subr.mxu0 0.0
    %444 = vmatpush1.msra.mxu0 0.0
    %445 = vmatprep.subr.mxu0 0.0
    %446 = vmatpush1.msra.mxu0 0.0
    %447 = vmatprep.subr.mxu0 0.0
    %448 = vmatpush1.msra.mxu0 0.0
    %449 = vmatprep.mubr.f32.mxu0 0.0
    %450 = vmatmul.mubr.f32.gmra.mrb[0].mxu0 %v320
    %v451 = vpop.f32.mrb[0].mxu0
    %v452 = vadd.f32 %v373, %v451
    %v453 = vpop.f32.mrb[0].mxu0
    %v454 = vadd.f32 %v377, %v453
    %455 = vdwg.mxu0
    %456 = vmatprep.subr.mxu0 0.0
    %457 = vmatpush1.msra.mxu0 %v323
    %458 = vmatprep.subr.mxu0 0.0
    %459 = vmatpush1.msra.mxu0 %v326
    %460 = vmatprep.subr.mxu0 0.0
    %461 = vmatpush1.msra.mxu0 %v329
    %462 = vmatprep.subr.mxu0 0.0
    %463 = vmatpush1.msra.mxu0 %v332
    %464 = vmatprep.subr.mxu0 0.0
    %465 = vmatpush1.msra.mxu0 %v335
    %466 = vmatprep.subr.mxu0 0.0
    %467 = vmatpush1.msra.mxu0 %v338
    %468 = vmatprep.subr.mxu0 0.0
    %469 = vmatpush1.msra.mxu0 %v341
    %470 = vmatprep.subr.mxu0 0.0
    %471 = vmatpush1.msra.mxu0 %v344
    %472 = vmatprep.subr.mxu0 0.0
    %473 = vmatpush1.msra.mxu0 %v347
    %474 = vmatprep.subr.mxu0 0.0
    %475 = vmatpush1.msra.mxu0 %v350
    %476 = vmatprep.subr.mxu0 0.0
    %477 = vmatpush1.msra.mxu0 %v353
    %478 = vmatprep.subr.mxu0 0.0
    %479 = vmatpush1.msra.mxu0 %v356
    %480 = vmatprep.subr.mxu0 0.0
    %481 = vmatpush1.msra.mxu0 %v359
    %482 = vmatprep.subr.mxu0 0.0
    %483 = vmatpush1.msra.mxu0 %v362
    %484 = vmatprep.subr.mxu0 0.0
    %485 = vmatpush1.msra.mxu0 %v365
    %486 = vmatprep.subr.mxu0 0.0
    %487 = vmatpush1.msra.mxu0 %v368
    %488 = vmatprep.subr.mxu0 0.0
    %489 = vmatpush1.msra.mxu0 0.0
    %490 = vmatprep.subr.mxu0 0.0
    %491 = vmatpush1.msra.mxu0 0.0
    %492 = vmatprep.subr.mxu0 0.0
    %493 = vmatpush1.msra.mxu0 0.0
    %494 = vmatprep.subr.mxu0 0.0
    %495 = vmatpush1.msra.mxu0 0.0
    %496 = vmatprep.subr.mxu0 0.0
    %497 = vmatpush1.msra.mxu0 0.0
    %498 = vmatprep.subr.mxu0 0.0
    %499 = vmatpush1.msra.mxu0 0.0
    %500 = vmatprep.subr.mxu0 0.0
    %501 = vmatpush1.msra.mxu0 0.0
    %502 = vmatprep.subr.mxu0 0.0
    %503 = vmatpush1.msra.mxu0 0.0
    %504 = vmatprep.subr.mxu0 0.0
    %505 = vmatpush1.msra.mxu0 0.0
    %506 = vmatprep.subr.mxu0 0.0
    %507 = vmatpush1.msra.mxu0 0.0
    %508 = vmatprep.subr.mxu0 0.0
    %509 = vmatpush1.msra.mxu0 0.0
    %510 = vmatprep.subr.mxu0 0.0
    %511 = vmatpush1.msra.mxu0 0.0
    %512 = vmatprep.subr.mxu0 0.0
    %513 = vmatpush1.msra.mxu0 0.0
    %514 = vmatprep.subr.mxu0 0.0
    %515 = vmatpush1.msra.mxu0 0.0
    %516 = vmatprep.subr.mxu0 0.0
    %517 = vmatpush1.msra.mxu0 0.0
    %518 = vmatprep.subr.mxu0 0.0
    %519 = vmatpush1.msra.mxu0 0.0
    %520 = vmatprep.mubr.f32.mxu0 0.0
    %521 = vmatmul.mubr.f32.gmra.mrb[0].mxu0 %v320
    %v522 = vpop.f32.mrb[0].mxu0
    %v523 = vadd.f32 %v381, %v522
    %v524 = vpop.f32.mrb[0].mxu0
    %525 = vdwg.mxu0
    %v526 = vld [vmem:[#allocation10] sm:$0xff]
    %v527 = vld [vmem:[#allocation10 + $0x8] sm:$0xff]
    %v528 = vld [vmem:[#allocation10 + $0x10] sm:$0xff]
    %v529 = vld [vmem:[#allocation10 + $0x18] sm:$0xff]
    %v530 = vld [vmem:[#allocation10 + $0x20] sm:$0xff]
    %v531 = vld [vmem:[#allocation10 + $0x28] sm:$0xff]
    %v532 = vld [vmem:[#allocation10 + $0x30] sm:$0xff]
    %v533 = vld [vmem:[#allocation10 + $0x38] sm:$0xff]
    %v534 = vld [vmem:[#allocation10 + $0x40] sm:$0xff]
    %v535 = vld [vmem:[#allocation10 + $0x48] sm:$0xff]
    %v536 = vld [vmem:[#allocation10 + $0x50] sm:$0xff]
    %v537 = vld [vmem:[#allocation10 + $0x58] sm:$0xff]
    %v538 = vld [vmem:[#allocation10 + $0x60] sm:$0xff]
    %v539 = vld [vmem:[#allocation10 + $0x68] sm:$0xff]
    %v540 = vld [vmem:[#allocation10 + $0x70] sm:$0xff]
    %v541 = vld [vmem:[#allocation10 + $0x78] sm:$0xff]
    %v542 = vld [vmem:[#allocation10 + $0x80] sm:$0xff]
    %v543 = vld [vmem:[#allocation10 + $0x88] sm:$0xff]
    %v544 = vld [vmem:[#allocation10 + $0x90] sm:$0xff]
    %v545 = vld [vmem:[#allocation10 + $0x98] sm:$0xff]
    %v546 = vld [vmem:[#allocation10 + $0xa0] sm:$0xff]
    %v547 = vld [vmem:[#allocation10 + $0xa8] sm:$0xff]
    %v548 = vld [vmem:[#allocation10 + $0xb0] sm:$0xff]
    %v549 = vld [vmem:[#allocation10 + $0xb8] sm:$0xff]
    %v550 = vld [vmem:[#allocation10 + $0xc0] sm:$0xff]
    %v551 = vld [vmem:[#allocation10 + $0xc8] sm:$0xff]
    %v552 = vld [vmem:[#allocation10 + $0xd0] sm:$0xff]
    %v553 = vld [vmem:[#allocation10 + $0xd8] sm:$0xff]
    %v554 = vld [vmem:[#allocation10 + $0xe0] sm:$0xff]
    %v555 = vld [vmem:[#allocation10 + $0xe8] sm:$0xff]
    %v556 = vld [vmem:[#allocation10 + $0xf0] sm:$0xff]
    %v557 = vld [vmem:[#allocation10 + $0xf8] sm:$0xff]
    %v558 = vld [vmem:[#allocation10 + $0x100] sm:$0xff]
    %v559 = vld [vmem:[#allocation10 + $0x108] sm:$0xff]
    %v560 = vld [vmem:[#allocation10 + $0x110] sm:$0xff]
    %v561 = vld [vmem:[#allocation10 + $0x118] sm:$0xff]
    %v562 = vld [vmem:[#allocation10 + $0x120] sm:$0xff]
    %v563 = vld [vmem:[#allocation10 + $0x128] sm:$0xff]
    %v564 = vld [vmem:[#allocation10 + $0x130] sm:$0xff]
    %v565 = vld [vmem:[#allocation10 + $0x138] sm:$0xff]
    %v566 = vld [vmem:[#allocation10 + $0x140] sm:$0xff]
    %v567 = vld [vmem:[#allocation10 + $0x148] sm:$0xff]
    %v568 = vld [vmem:[#allocation10 + $0x150] sm:$0xff]
    %v569 = vld [vmem:[#allocation10 + $0x158] sm:$0xff]
    %v570 = vld [vmem:[#allocation10 + $0x160] sm:$0xff]
    %v571 = vld [vmem:[#allocation10 + $0x168] sm:$0xff]
    %v572 = vld [vmem:[#allocation10 + $0x170] sm:$0xff]
    %v573 = vld [vmem:[#allocation10 + $0x178] sm:$0xff]
    %v575 = vlaneseq
    %v576 = vshrl.u32 %v575, 7
    %v577 = vsub.s32 0, %v576
    %v578 = vrot.slane %v149, %v577
    %v579 = vlaneseq
    %v580 = vshrl.u32 %v579, 7
    %v581 = vsub.s32 1, %v580
    %v582 = vrot.slane %v149, %v581
    %v583 = vlaneseq
    %v584 = vshrl.u32 %v583, 7
    %v585 = vsub.s32 2, %v584
    %v586 = vrot.slane %v149, %v585
    %590 = vmatprep.subr.mxu0 %v527
    %591 = vmatpush1.msra.mxu0 %v526
    %592 = vmatprep.subr.mxu0 %v530
    %593 = vmatpush1.msra.mxu0 %v529
    %594 = vmatprep.subr.mxu0 %v533
    %595 = vmatpush1.msra.mxu0 %v532
    %596 = vmatprep.subr.mxu0 %v536
    %597 = vmatpush1.msra.mxu0 %v535
    %598 = vmatprep.subr.mxu0 %v539
    %599 = vmatpush1.msra.mxu0 %v538
    %600 = vmatprep.subr.mxu0 %v542
    %601 = vmatpush1.msra.mxu0 %v541
    %602 = vmatprep.subr.mxu0 %v545
    %603 = vmatpush1.msra.mxu0 %v544
    %604 = vmatprep.subr.mxu0 %v548
    %605 = vmatpush1.msra.mxu0 %v547
    %606 = vmatprep.subr.mxu0 %v551
    %607 = vmatpush1.msra.mxu0 %v550
    %608 = vmatprep.subr.mxu0 %v554
    %609 = vmatpush1.msra.mxu0 %v553
    %610 = vmatprep.subr.mxu0 %v557
    %611 = vmatpush1.msra.mxu0 %v556
    %612 = vmatprep.subr.mxu0 %v560
    %613 = vmatpush1.msra.mxu0 %v559
    %614 = vmatprep.subr.mxu0 %v563
    %615 = vmatpush1.msra.mxu0 %v562
    %616 = vmatprep.subr.mxu0 %v566
    %617 = vmatpush1.msra.mxu0 %v565
    %618 = vmatprep.subr.mxu0 %v569
    %619 = vmatpush1.msra.mxu0 %v568
    %620 = vmatprep.subr.mxu0 %v572
    %621 = vmatpush1.msra.mxu0 %v571
    %622 = vmatprep.subr.mxu0 0.0
    %623 = vmatpush1.msra.mxu0 0.0
    %624 = vmatprep.subr.mxu0 0.0
    %625 = vmatpush1.msra.mxu0 0.0
    %626 = vmatprep.subr.mxu0 0.0
    %627 = vmatpush1.msra.mxu0 0.0
    %628 = vmatprep.subr.mxu0 0.0
    %629 = vmatpush1.msra.mxu0 0.0
    %630 = vmatprep.subr.mxu0 0.0
    %631 = vmatpush1.msra.mxu0 0.0
    %632 = vmatprep.subr.mxu0 0.0
    %633 = vmatpush1.msra.mxu0 0.0
    %634 = vmatprep.subr.mxu0 0.0
    %635 = vmatpush1.msra.mxu0 0.0
    %636 = vmatprep.subr.mxu0 0.0
    %637 = vmatpush1.msra.mxu0 0.0
    %638 = vmatprep.subr.mxu0 0.0
    %639 = vmatpush1.msra.mxu0 0.0
    %640 = vmatprep.subr.mxu0 0.0
    %641 = vmatpush1.msra.mxu0 0.0
    %642 = vmatprep.subr.mxu0 0.0
    %643 = vmatpush1.msra.mxu0 0.0
    %644 = vmatprep.subr.mxu0 0.0
    %645 = vmatpush1.msra.mxu0 0.0
    %646 = vmatprep.subr.mxu0 0.0
    %647 = vmatpush1.msra.mxu0 0.0
    %648 = vmatprep.subr.mxu0 0.0
    %649 = vmatpush1.msra.mxu0 0.0
    %650 = vmatprep.subr.mxu0 0.0
    %651 = vmatpush1.msra.mxu0 0.0
    %652 = vmatprep.subr.mxu0 0.0
    %653 = vmatpush1.msra.mxu0 0.0
    %654 = vmatprep.mubr.f32.mxu0 0.0
    %655 = vmatmul.mubr.f32.gmra.mrb[0].mxu0 %v146
    %v656 = vpop.f32.mrb[0].mxu0
    %v657 = vadd.f32 %v578, %v656
    %v658 = vpop.f32.mrb[0].mxu0
    %v659 = vadd.f32 %v582, %v658
    %660 = vdwg.mxu0
    %661 = vmatprep.subr.mxu0 0.0
    %662 = vmatpush1.msra.mxu0 %v528
    %663 = vmatprep.subr.mxu0 0.0
    %664 = vmatpush1.msra.mxu0 %v531
    %665 = vmatprep.subr.mxu0 0.0
    %666 = vmatpush1.msra.mxu0 %v534
    %667 = vmatprep.subr.mxu0 0.0
    %668 = vmatpush1.msra.mxu0 %v537
    %669 = vmatprep.subr.mxu0 0.0
    %670 = vmatpush1.msra.mxu0 %v540
    %671 = vmatprep.subr.mxu0 0.0
    %672 = vmatpush1.msra.mxu0 %v543
    %673 = vmatprep.subr.mxu0 0.0
    %674 = vmatpush1.msra.mxu0 %v546
    %675 = vmatprep.subr.mxu0 0.0
    %676 = vmatpush1.msra.mxu0 %v549
    %677 = vmatprep.subr.mxu0 0.0
    %678 = vmatpush1.msra.mxu0 %v552
    %679 = vmatprep.subr.mxu0 0.0
    %680 = vmatpush1.msra.mxu0 %v555
    %681 = vmatprep.subr.mxu0 0.0
    %682 = vmatpush1.msra.mxu0 %v558
    %683 = vmatprep.subr.mxu0 0.0
    %684 = vmatpush1.msra.mxu0 %v561
    %685 = vmatprep.subr.mxu0 0.0
    %686 = vmatpush1.msra.mxu0 %v564
    %687 = vmatprep.subr.mxu0 0.0
    %688 = vmatpush1.msra.mxu0 %v567
    %689 = vmatprep.subr.mxu0 0.0
    %690 = vmatpush1.msra.mxu0 %v570
    %691 = vmatprep.subr.mxu0 0.0
    %692 = vmatpush1.msra.mxu0 %v573
    %693 = vmatprep.subr.mxu0 0.0
    %694 = vmatpush1.msra.mxu0 0.0
    %695 = vmatprep.subr.mxu0 0.0
    %696 = vmatpush1.msra.mxu0 0.0
    %697 = vmatprep.subr.mxu0 0.0
    %698 = vmatpush1.msra.mxu0 0.0
    %699 = vmatprep.subr.mxu0 0.0
    %700 = vmatpush1.msra.mxu0 0.0
    %701 = vmatprep.subr.mxu0 0.0
    %702 = vmatpush1.msra.mxu0 0.0
    %703 = vmatprep.subr.mxu0 0.0
    %704 = vmatpush1.msra.mxu0 0.0
    %705 = vmatprep.subr.mxu0 0.0
    %706 = vmatpush1.msra.mxu0 0.0
    %707 = vmatprep.subr.mxu0 0.0
    %708 = vmatpush1.msra.mxu0 0.0
    %709 = vmatprep.subr.mxu0 0.0
    %710 = vmatpush1.msra.mxu0 0.0
    %711 = vmatprep.subr.mxu0 0.0
    %712 = vmatpush1.msra.mxu0 0.0
    %713 = vmatprep.subr.mxu0 0.0
    %714 = vmatpush1.msra.mxu0 0.0
    %715 = vmatprep.subr.mxu0 0.0
    %716 = vmatpush1.msra.mxu0 0.0
    %717 = vmatprep.subr.mxu0 0.0
    %718 = vmatpush1.msra.mxu0 0.0
    %719 = vmatprep.subr.mxu0 0.0
    %720 = vmatpush1.msra.mxu0 0.0
    %721 = vmatprep.subr.mxu0 0.0
    %722 = vmatpush1.msra.mxu0 0.0
    %723 = vmatprep.subr.mxu0 0.0
    %724 = vmatpush1.msra.mxu0 0.0
    %725 = vmatprep.mubr.f32.mxu0 0.0
    %726 = vmatmul.mubr.f32.gmra.mrb[0].mxu0 %v146
    %v727 = vpop.f32.mrb[0].mxu0
    %v728 = vadd.f32 %v586, %v727
    %v729 = vpop.f32.mrb[0].mxu0
    %730 = vdwg.mxu0
    %v731 = vadd.f32 %v452, %v657
    %v732 = vxor.u32 %v731, 2147483648
    %v733 = vmul.f32 %v732, 1.442695
    %v734 = vpow.pop %v733
    %v735 = vadd.f32 %v734, 1.0
    %v736 = vrcp.pop %v735
    %v737 = vmul.f32 1.0, %v736
    %v738 = vadd.f32 %v454, %v659
    %v739 = vxor.u32 %v738, 2147483648
    %v740 = vmul.f32 %v739, 1.442695
    %v741 = vpow.pop %v740
    %v742 = vadd.f32 %v741, 1.0
    %v743 = vrcp.pop %v742
    %v744 = vmul.f32 1.0, %v743
    %v745 = vmul.f32 %v737, %v728
    %v746 = vadd.f32 %v523, %v745
    %v747 = vtanh.pop %v746
    %v748 = vsub.f32 1.0, %v744
    %v749 = vmul.f32 %v748, %v747
    %v750 = vmul.f32 %v744, %v146
    %v751 = vadd.f32 %v749, %v750
    %752 = vst [vmem:[#allocation17] sm:$0xf] %v751
    %v753 = vld [vmem:[#allocation13] sm:$0xff]
    %v754 = vld [vmem:[#allocation13 + $0x8] sm:$0xff]
    %v755 = vld [vmem:[#allocation13 + $0x10] sm:$0xff]
    %v756 = vld [vmem:[#allocation13 + $0x18] sm:$0xff]
    %v757 = vld [vmem:[#allocation13 + $0x20] sm:$0xff]
    %v758 = vld [vmem:[#allocation13 + $0x28] sm:$0xff]
    %v759 = vld [vmem:[#allocation13 + $0x30] sm:$0xff]
    %v760 = vld [vmem:[#allocation13 + $0x38] sm:$0xff]
    %v761 = vld [vmem:[#allocation13 + $0x40] sm:$0xff]
    %v762 = vld [vmem:[#allocation13 + $0x48] sm:$0xff]
    %v763 = vld [vmem:[#allocation13 + $0x50] sm:$0xff]
    %v764 = vld [vmem:[#allocation13 + $0x58] sm:$0xff]
    %v765 = vld [vmem:[#allocation13 + $0x60] sm:$0xff]
    %v766 = vld [vmem:[#allocation13 + $0x68] sm:$0xff]
    %v767 = vld [vmem:[#allocation13 + $0x70] sm:$0xff]
    %v768 = vld [vmem:[#allocation13 + $0x78] sm:$0xff]
    %v770 = vlaneseq
    %v771 = vshrl.u32 %v770, 7
    %v772 = vsub.s32 0, %v771
    %v773 = vrot.slane %v150, %v772
    %775 = vmatprep.subr.mxu0 0.0
    %776 = vmatpush1.msra.mxu0 %v753
    %777 = vmatprep.subr.mxu0 0.0
    %778 = vmatpush1.msra.mxu0 %v754
    %779 = vmatprep.subr.mxu0 0.0
    %780 = vmatpush1.msra.mxu0 %v755
    %781 = vmatprep.subr.mxu0 0.0
    %782 = vmatpush1.msra.mxu0 %v756
    %783 = vmatprep.subr.mxu0 0.0
    %784 = vmatpush1.msra.mxu0 %v757
    %785 = vmatprep.subr.mxu0 0.0
    %786 = vmatpush1.msra.mxu0 %v758
    %787 = vmatprep.subr.mxu0 0.0
    %788 = vmatpush1.msra.mxu0 %v759
    %789 = vmatprep.subr.mxu0 0.0
    %790 = vmatpush1.msra.mxu0 %v760
    %791 = vmatprep.subr.mxu0 0.0
    %792 = vmatpush1.msra.mxu0 %v761
    %793 = vmatprep.subr.mxu0 0.0
    %794 = vmatpush1.msra.mxu0 %v762
    %795 = vmatprep.subr.mxu0 0.0
    %796 = vmatpush1.msra.mxu0 %v763
    %797 = vmatprep.subr.mxu0 0.0
    %798 = vmatpush1.msra.mxu0 %v764
    %799 = vmatprep.subr.mxu0 0.0
    %800 = vmatpush1.msra.mxu0 %v765
    %801 = vmatprep.subr.mxu0 0.0
    %802 = vmatpush1.msra.mxu0 %v766
    %803 = vmatprep.subr.mxu0 0.0
    %804 = vmatpush1.msra.mxu0 %v767
    %805 = vmatprep.subr.mxu0 0.0
    %806 = vmatpush1.msra.mxu0 %v768
    %807 = vmatprep.subr.mxu0 0.0
    %808 = vmatpush1.msra.mxu0 0.0
    %809 = vmatprep.subr.mxu0 0.0
    %810 = vmatpush1.msra.mxu0 0.0
    %811 = vmatprep.subr.mxu0 0.0
    %812 = vmatpush1.msra.mxu0 0.0
    %813 = vmatprep.subr.mxu0 0.0
    %814 = vmatpush1.msra.mxu0 0.0
    %815 = vmatprep.subr.mxu0 0.0
    %816 = vmatpush1.msra.mxu0 0.0
    %817 = vmatprep.subr.mxu0 0.0
    %818 = vmatpush1.msra.mxu0 0.0
    %819 = vmatprep.subr.mxu0 0.0
    %820 = vmatpush1.msra.mxu0 0.0
    %821 = vmatprep.subr.mxu0 0.0
    %822 = vmatpush1.msra.mxu0 0.0
    %823 = vmatprep.subr.mxu0 0.0
    %824 = vmatpush1.msra.mxu0 0.0
    %825 = vmatprep.subr.mxu0 0.0
    %826 = vmatpush1.msra.mxu0 0.0
    %827 = vmatprep.subr.mxu0 0.0
    %828 = vmatpush1.msra.mxu0 0.0
    %829 = vmatprep.subr.mxu0 0.0
    %830 = vmatpush1.msra.mxu0 0.0
    %831 = vmatprep.subr.mxu0 0.0
    %832 = vmatpush1.msra.mxu0 0.0
    %833 = vmatprep.subr.mxu0 0.0
    %834 = vmatpush1.msra.mxu0 0.0
    %835 = vmatprep.subr.mxu0 0.0
    %836 = vmatpush1.msra.mxu0 0.0
    %837 = vmatprep.subr.mxu0 0.0
    %838 = vmatpush1.msra.mxu0 0.0
    %839 = vmatprep.mubr.f32.mxu0 0.0
    %840 = vmatmul.mubr.f32.gmra.mrb[0].mxu0 %v751
    %v841 = vpop.f32.mrb[0].mxu0
    %v842 = vadd.f32 %v773, %v841
    %v843 = vpop.f32.mrb[0].mxu0
    %844 = vdwg.mxu0
    %845 = vst [vmem:[#allocation16] sm:$0xf] %v842
    // Predicated region
    $region82: #{tpu_custom_call.1} parent=1 // pred_check
      _
    $region83: #{tpu_custom_call.1} parent=1 // pred_check_branch
      %847 = sbr.rel (0) target = $region85
    $region84: #{tpu_custom_call.1} parent=1 // pred_region
      %s849 = ssub.s32 64, 64
      %850 = vsyncadd [#allocation4], %s849
      %s852 = sshll.u32 [#allocation16], 4
      %s853 = int_to_ptr.vmem [resolvable:$true] %s852
      %855 = dma.vmem_to_hbm [thread:$0]  %s853, 64, %s12, [#allocation4]
    $region85: #{tpu_custom_call.1} parent=1 // pred_fallthru
      _
    // Predicated region
    $region86: #{tpu_custom_call.1} parent=1 // pred_check
      _
    $region87: #{tpu_custom_call.1} parent=1 // pred_check_branch
      %857 = sbr.rel (0) target = $region89
    $region88: #{tpu_custom_call.1} parent=1 // pred_region
      %s859 = ssub.s32 64, 64
      %860 = vsyncadd [#allocation18], %s859
      %s862 = sshll.u32 [#allocation17], 4
      %s863 = int_to_ptr.vmem [resolvable:$true] %s862
      %865 = dma.vmem_to_hbm [thread:$0]  %s863, 64, %s13, [#allocation18]
    $region89: #{tpu_custom_call.1} parent=1 // pred_fallthru
      _
    // Predicated region
    $region90: #{tpu_custom_call.1} parent=1 // pred_check
      _
    $region91: #{tpu_custom_call.1} parent=1 // pred_check_branch
      %867 = sbr.rel (0) target = $region93
    $region92: #{tpu_custom_call.1} parent=1 // pred_region
      %868 = dma.done [#allocation4], 64
    $region93: #{tpu_custom_call.1} parent=1 // pred_fallthru
      _
    // Predicated region
    $region94: #{tpu_custom_call.1} parent=1 // pred_check
      _
    $region95: #{tpu_custom_call.1} parent=1 // pred_check_branch
      %870 = sbr.rel (0) target = $region97
    $region96: #{tpu_custom_call.1} parent=1 // pred_region
      %871 = dma.done [#allocation18], 64
    $region97: #{tpu_custom_call.1} parent=1 // pred_fallthru
      _
    %872 = vsyncpa [#allocation3], 1
    %873 = vsyncpa [#allocation6], 1
    %874 = vsyncpa [#allocation9], 1
    %875 = vsyncpa [#allocation12], 1
    %876 = vsyncpa [#allocation15], 1
    %877 = vsyncpa [#allocation4], 1
    %878 = vsyncpa [#allocation18], 1

</llo_original>
